<compile_context>
chip_gen: v5e
topology: v5e:2x2
jax: 0.10.0
libtpu: 0.0.40
codegen_flags: <defaults>
</compile_context>

<pallas_src>
import functools

import jax
import jax.numpy as jnp
from jax import lax
from jax.experimental import pallas as pl
from jax.experimental.pallas import tpu as pltpu

_LANE = 128


def _round_up(x, m):
    return ((x + m - 1) // m) * m


def _round_down(x, m):
    return (x // m) * m


def _vmem_budget():
    """Returns (vmem_limit_bytes, usable byte budget for our buffers)."""
    try:
        phys = pltpu.get_tpu_info().vmem_capacity_bytes
    except Exception:
        phys = 64 << 20                       # assume the tightest case (v7x)
    if phys >= (128 << 20):                   # v5e / v6e: 128 MiB physical
        return 64 << 20, 56 << 20
    return 48 << 20, 40 << 20                 # v7x: 64 MiB physical per TC


def _choose_tiles(B, F, x_itemsize, w_itemsize, budget_bytes,
                  target_tile_bytes=4 << 20):
    """Pick (TB, TK) so the per-step x tile is multi-MiB but everything fits VMEM."""
    min_tb = B if B <= _LANE else _LANE
    fudge = 512 * 1024                        # out tile + f32 accumulator + slack

    # --- Branch A: whole feature axis per step (TK == F). ---
    row_bytes = F * x_itemsize
    avail_a = budget_bytes - fudge - 2 * F * w_itemsize   # 2x resident weight buffer
    max_tb_full_f = avail_a // (2 * row_bytes) if avail_a > 0 else -1

    if max_tb_full_f >= min_tb:
        tk = F
        tb = max(1, target_tile_bytes // row_bytes)
        tb = min(tb, max_tb_full_f, _round_up(B, _LANE))
        if B > _LANE:
            # Keep >= ~4 batch tiles for large B so v7x balances its two TCs.
            tb = min(tb, max(_LANE, _round_up((B + 3) // 4, _LANE)))
            tb = max(_round_down(tb, _LANE), _LANE)
        else:
            tb = B
        return int(tb), int(tk)

    # --- Branch B: F too large -> tile the feature (reduction) axis. ---
    tb = min_tb
    avail_b = max(budget_bytes - fudge, 1 << 20)
    per_col = 2 * tb * x_itemsize + 2 * w_itemsize        # bytes per feature column
    tk_max = _round_down(avail_b // per_col, _LANE)
    tk_tgt = _round_down(max(target_tile_bytes // (tb * x_itemsize), _LANE), _LANE)
    tk = max(_LANE, min(tk_max, tk_tgt, _round_up(F, _LANE)))
    return int(tb), int(tk)


def _logreg_kernel(x_ref, w_ref, b_ref, o_ref, acc_ref, *, feat, tk):
    # x_ref: (TB, TK) VMEM tile        w_ref: (1, TK) VMEM tile
    # b_ref: (1,) SMEM scalar          o_ref: (1, TB) lane-dense output tile
    # acc_ref: (1, TB) f32 VMEM scratch accumulator (resident across k).
    k = pl.program_id(1)

    @pl.when(k == 0)
    def _init():
        acc_ref[...] = jnp.zeros_like(acc_ref)

    # Multiply in the inputs' native dtype (bf16 stays bf16 on v6e/v7x);
    # accumulate the cross-lane reduction in f32.
    prod = x_ref[...] * w_ref[...]                               # (TB, TK)
    if feat % tk:                                                # static: partial last K tile
        col = k * tk + lax.broadcasted_iota(jnp.int32, prod.shape, 1)
        prod = jnp.where(col < feat, prod, jnp.zeros_like(prod))
    part = jnp.sum(prod.astype(jnp.float32), axis=-1)            # (TB,) f32
    acc_ref[...] += part[None, :]

    @pl.when(k == pl.num_programs(1) - 1)
    def _finish():
        o_ref[...] = (acc_ref[...] + b_ref[0]).astype(o_ref.dtype)


def logistic_regression_forward(x, weight, bias, *, batch_tile=None, feature_tile=None):
    """x: (B, F), weight: (1, F) (PyTorch layout), bias: (1,) -> logits (B, 1)."""
    B, F = x.shape
    assert weight.shape == (1, F)
    out_dtype = jnp.promote_types(x.dtype, weight.dtype)

    vmem_limit, budget = _vmem_budget()
    tb, tk = _choose_tiles(B, F,
                           jnp.dtype(x.dtype).itemsize,
                           jnp.dtype(weight.dtype).itemsize,
                           budget)
    if batch_tile is not None:
        tb = int(batch_tile)
    if feature_tile is not None:
        tk = int(feature_tile)

    nb = pl.cdiv(B, tb)       # partial last batch block: garbage rows sliced off below
    nk = pl.cdiv(F, tk)       # partial last feature block: masked in-kernel

    kernel = functools.partial(_logreg_kernel, feat=F, tk=tk)

    out = pl.pallas_call(
        kernel,
        out_shape=jax.ShapeDtypeStruct((1, B), out_dtype),
        grid=(nb, nk),
        in_specs=[
            # x: one (TB, TK) tile per step -> pipelined / double-buffered DMA.
            pl.BlockSpec((tb, tk), lambda i, k: (i, k)),
            # weight: lane-dense (1, TK) tile, constant along the batch axis.
            pl.BlockSpec((1, tk), lambda i, k: (0, k)),
            # bias: scalar in SMEM.
            pl.BlockSpec(memory_space=pltpu.MemorySpace.SMEM),
        ],
        # Lane-dense output: (1, TB) slab of the (1, B) buffer, resident across k.
        out_specs=pl.BlockSpec((1, tb), lambda i, k: (0, i)),
        scratch_shapes=[pltpu.VMEM((1, tb), jnp.float32)],
        compiler_params=pltpu.CompilerParams(
            dimension_semantics=("parallel", "arbitrary"),
            vmem_limit_bytes=vmem_limit,
        ),
    )(x, weight, bias.astype(jnp.float32).reshape(1))

    return out.reshape(B, 1)


def init_params(num_features, key, dtype=jnp.float32):
    """Deterministic init mirroring nn.Linear's default U(-1/sqrt(F), 1/sqrt(F))."""
    kw, kb = jax.random.split(key)
    bound = 1.0 / jnp.sqrt(jnp.float32(num_features))
    weight = jax.random.uniform(kw, (1, num_features), dtype, -bound, bound)
    bias = jax.random.uniform(kb, (1,), dtype, -bound, bound)
    return weight, bias


if __name__ == "__main__":
    key = jax.random.PRNGKey(0)
    kx, kp, kx2, kp2 = jax.random.split(key, 4)

    # Small shape consistent with the module: batch=8, num_features=32.
    batch, num_features = 8, 32
    x = jax.random.normal(kx, (batch, num_features), jnp.float32)
    weight, bias = init_params(num_features, kp)

    out = jax.block_until_ready(logistic_regression_forward(x, weight, bias))
    ref = x @ weight.T + bias
    assert out.shape == (batch, 1)
    assert jnp.allclose(out, ref, atol=1e-4, rtol=1e-4)

    # Exercise: multi-tile batch grid with a partial last block (no padding),
    # plus the feature-reduction axis with a masked partial last feature tile.
    b2, f2 = 300, 200
    x2 = jax.random.normal(kx2, (b2, f2), jnp.float32)
    w2, bias2 = init_params(f2, kp2)
    out2 = jax.block_until_ready(
        logistic_regression_forward(x2, w2, bias2, batch_tile=128, feature_tile=128))
    ref2 = x2 @ w2.T + bias2
    assert out2.shape == (b2, 1)
    assert jnp.allclose(out2, ref2, atol=1e-4, rtol=1e-4)

    print("KERNEL_OK")
</pallas_src>

<mosaic_0001>
module attributes {stable_mosaic.version = 11 : i64} {
  func.func @_logreg_kernel(%arg0: i32, %arg1: i32, %arg2: memref<8x32xf32, #tpu.memory_space<vmem>>, %arg3: memref<1x32xf32, #tpu.memory_space<vmem>>, %arg4: memref<1xf32, #tpu.memory_space<smem>>, %arg5: memref<1x8xf32, #tpu.memory_space<vmem>>, %arg6: memref<1x8xf32, #tpu.memory_space<vmem>>) attributes {dimension_semantics = [#tpu.dimension_semantics<parallel>, #tpu.dimension_semantics<arbitrary>], iteration_bounds = array<i64: 1, 1>, scalar_prefetch = 0 : i64, scratch_operands = 1 : i64, tpu.core_type = #tpu.core_type<tc>, window_params = [{transform_indices = @transform_0, window_bounds = array<i64: 8, 32>}, {transform_indices = @transform_1, window_bounds = array<i64: 1, 32>}, {transform_indices = @transform_2, window_bounds = array<i64: 1>}, {transform_indices = @transform_3, window_bounds = array<i64: 1, 8>}]} {
    %c0_i32 = arith.constant 0 : i32
    %0 = arith.cmpi eq, %arg1, %c0_i32 : i32
    %1 = arith.extui %0 : i1 to i32
    %c0_i32_0 = arith.constant 0 : i32
    %2 = arith.cmpi ne, %1, %c0_i32_0 : i32
    scf.if %2 {
      %cst_10 = arith.constant 0.000000e+00 : f32
      %15 = vector.broadcast %cst_10 : f32 to vector<1x8xf32>
      %c0_11 = arith.constant 0 : index
      %c0_12 = arith.constant 0 : index
      %16 = vector.load %arg6[%c0_11, %c0_12] : memref<1x8xf32, #tpu.memory_space<vmem>>, vector<1x8xf32>
      tpu.vector_store %arg6[%c0_11, %c0_12], %15 {strides = array<i32>} : memref<1x8xf32, #tpu.memory_space<vmem>>, vector<1x8xf32>,
    } else {
    }
    %c0 = arith.constant 0 : index
    %c0_1 = arith.constant 0 : index
    %3 = vector.load %arg2[%c0, %c0_1] : memref<8x32xf32, #tpu.memory_space<vmem>>, vector<8x32xf32>
    %c0_2 = arith.constant 0 : index
    %c0_3 = arith.constant 0 : index
    %4 = vector.load %arg3[%c0_2, %c0_3] : memref<1x32xf32, #tpu.memory_space<vmem>>, vector<1x32xf32>
    %5 = vector.broadcast %4 : vector<1x32xf32> to vector<8x32xf32>
    %6 = arith.mulf %3, %5 : vector<8x32xf32>
    %cst = arith.constant dense<0.000000e+00> : vector<8xf32>
    %7 = vector.multi_reduction <add>, %6, %cst [1] : vector<8x32xf32> to vector<8xf32>
    %c0_4 = arith.constant 0 : index
    %c0_5 = arith.constant 0 : index
    %8 = vector.load %arg6[%c0_4, %c0_5] : memref<1x8xf32, #tpu.memory_space<vmem>>, vector<1x8xf32>
    %9 = vector.shape_cast %7 : vector<8xf32> to vector<1x8xf32>
    %10 = arith.addf %8, %9 : vector<1x8xf32>
    %c0_6 = arith.constant 0 : index
    %c0_7 = arith.constant 0 : index
    %11 = vector.load %arg6[%c0_6, %c0_7] : memref<1x8xf32, #tpu.memory_space<vmem>>, vector<1x8xf32>
    tpu.vector_store %arg6[%c0_6, %c0_7], %10 {strides = array<i32>} : memref<1x8xf32, #tpu.memory_space<vmem>>, vector<1x8xf32>,
    %c0_i32_8 = arith.constant 0 : i32
    %12 = arith.cmpi eq, %arg1, %c0_i32_8 : i32
    %13 = arith.extui %12 : i1 to i32
    %c0_i32_9 = arith.constant 0 : i32
    %14 = arith.cmpi ne, %13, %c0_i32_9 : i32
    scf.if %14 {
      %c0_10 = arith.constant 0 : index
      %c0_11 = arith.constant 0 : index
      %15 = vector.load %arg6[%c0_10, %c0_11] : memref<1x8xf32, #tpu.memory_space<vmem>>, vector<1x8xf32>
      %c0_12 = arith.constant 0 : index
      %16 = memref.load %arg4[%c0_12] : memref<1xf32, #tpu.memory_space<smem>>
      %17 = vector.broadcast %16 : f32 to vector<1x8xf32>
      %18 = arith.addf %15, %17 : vector<1x8xf32>
      %c0_13 = arith.constant 0 : index
      %c0_14 = arith.constant 0 : index
      %19 = vector.load %arg5[%c0_13, %c0_14] : memref<1x8xf32, #tpu.memory_space<vmem>>, vector<1x8xf32>
      tpu.vector_store %arg5[%c0_13, %c0_14], %18 {strides = array<i32>} : memref<1x8xf32, #tpu.memory_space<vmem>>, vector<1x8xf32>,
    } else {
    }
    return
  }
  func.func @transform_0(%arg0: i32, %arg1: i32) -> (i32, i32) {
    %c0_i32 = arith.constant 0 : i32
    return %arg0, %arg1 : i32, i32
  }
  func.func @transform_1(%arg0: i32, %arg1: i32) -> (i32, i32) {
    %c0_i32 = arith.constant 0 : i32
    %c0_i32_0 = arith.constant 0 : i32
    return %c0_i32, %arg1 : i32, i32
  }
  func.func @transform_2(%arg0: i32, %arg1: i32) -> i32 {
    %c0_i32 = arith.constant 0 : i32
    %c0_i32_0 = arith.constant 0 : i32
    return %c0_i32 : i32
  }
  func.func @transform_3(%arg0: i32, %arg1: i32) -> (i32, i32) {
    %c0_i32 = arith.constant 0 : i32
    %c0_i32_0 = arith.constant 0 : i32
    return %c0_i32, %arg0 : i32, i32
  }
}

</mosaic_0001>

<llo_original>
// kernel: tpu_custom_call.1
$region0: #{tpu_custom_call.1}
  #allocation0 [shape = 'u32[]', space=smem, size = 0x4, offset = 0x4, fixed_abs, tag = 'smem constant byte address 0x4 - core index']
  #allocation1 [shape = 'u32[72,128]{1,0:T(1,128)}', space=vmem, size = 0x9000, scoped, tag = 'internal scratch']
  #allocation2 [shape = 'f32[1,8]{1,0:T(1,128)}', space=vmem, size = 0x200, scoped, tag = 'scratch operand']
  #allocation3 [shape = 'f32[1]{0:T(128)S(6)}', space=smem, size = 0x200, scoped, tag = 'scoped memory for tpu_custom_call.1']
  %s0 = inlined_call_operand.hbm [shape: f32[8,32], index: 0, kind: input, shape index: {}]
  %s1 = inlined_call_operand.vmem [shape: f32[1,32], index: 1, kind: input, shape index: {}]
  %s2 = inlined_call_operand.<no memory space> [shape: f32[1], index: 2, kind: input, shape index: {}]
  %s3 = inlined_call_operand.hbm [shape: f32[1,8], index: 3, kind: output, shape index: {}]
  %s4 = sld [smem:[#allocation0]]
  $region34: #{tpu_custom_call.1} parent=0
    _
  %s6 = ssub.s32 1, %s4
  %s7 = scalar_select 0, %s6, %s4
  %8 = sst [smem:[#allocation3]] %s2
  $region1: #{tpu_custom_call.1} parent=0
    #allocation4 [shape = 'u8[4096]{0}', space=vmem, size = 0x1000, scoped, tag = 'input window, operand 0, single buffered']
    #allocation5 [shape = 's32[1]{0}', space=sflag, size = 0x4, scoped, tag = 'scoped memory for tpu_custom_call.1']
    #allocation6 [shape = 's32[1]{0}', space=sflag, size = 0x4, scoped, tag = 'scoped memory for tpu_custom_call.1']
    #allocation7 [shape = 'u8[512]{0}', space=vmem, size = 0x400, scoped, tag = 'output window, operand 0, single buffered']
    %9 = vsyncpa [#allocation5], 0
    %10 = vsyncpa [#allocation6], 0
    // Predicated region
    $region2: #{tpu_custom_call.1} parent=1 // pred_check
      _
    $region3: #{tpu_custom_call.1} parent=1 // pred_check_branch
      %12 = sbr.rel (0) target = $region5
    $region4: #{tpu_custom_call.1} parent=1 // pred_region
      %14 = vsyncadd [#allocation5], 0
      %s16 = sshll.u32 %s0, 4
      %s17 = int_to_ptr.hbm [resolvable:$true] %s16
      %s18 = sshll.u32 [#allocation4], 4
      %s19 = int_to_ptr.vmem [resolvable:$true] %s18
      %21 = dma.hbm_to_vmem [thread:$0]  %s17, 128, %s19, [#allocation5]
    $region5: #{tpu_custom_call.1} parent=1 // pred_fallthru
      _
    // Predicated region
    $region6: #{tpu_custom_call.1} parent=1 // pred_check
      _
    $region7: #{tpu_custom_call.1} parent=1 // pred_check_branch
      %23 = sbr.rel (0) target = $region9
    $region8: #{tpu_custom_call.1} parent=1 // pred_region
      _
    $region9: #{tpu_custom_call.1} parent=1 // pred_fallthru
      _
    // Predicated region
    $region10: #{tpu_custom_call.1} parent=1 // pred_check
      _
    $region11: #{tpu_custom_call.1} parent=1 // pred_check_branch
      %25 = sbr.rel (0) target = $region13
    $region12: #{tpu_custom_call.1} parent=1 // pred_region
      _
    $region13: #{tpu_custom_call.1} parent=1 // pred_fallthru
      _
    // Predicated region
    $region14: #{tpu_custom_call.1} parent=1 // pred_check
      _
    $region15: #{tpu_custom_call.1} parent=1 // pred_check_branch
      %27 = sbr.rel (0) target = $region17
    $region16: #{tpu_custom_call.1} parent=1 // pred_region
      %29 = dma.done [#allocation5], 128
    $region17: #{tpu_custom_call.1} parent=1 // pred_fallthru
      _
    %p30 = scmp.eq.s32.totalorder 0, 0
    // Predicated region
    $region18: #{tpu_custom_call.1} parent=1 // pred_check
      %p31 = pneg %p30
    $region19: #{tpu_custom_call.1} parent=1 // pred_check_branch
      %33 = sbr.rel (%p31) target = $region21
    $region20: #{tpu_custom_call.1} parent=1 // pred_region
      %vm34 = vcmask 57344
      %35 = vst.msk [vmem:[#allocation2] sm:$0x1] %vm34, 0.0
    $region21: #{tpu_custom_call.1} parent=1 // pred_fallthru
      _
    %v36 = vld [vmem:[#allocation4] sm:$0xff]
    %v37 = vld [vmem:[%s1] sm:$0x1]
    %v39 = vperm.slane %v37, 0
    %v41 = vmul.f32 %v36, %v39
    %vm42 = vcmask 261120
    %v43 = vsel %vm42, %v41, 0.0
    %44 = vadd.xlane.f32.xlu0 %v43
    %v45 = vpop.xlane.xlu0 %44
    %v46 = vld [vmem:[#allocation2] sm:$0x1]
    %v48 = vperm.slane %v45, 0
    %v49 = vperm.slane %v45, 1
    %v50 = vperm.slane %v45, 2
    %v51 = vperm.slane %v45, 3
    %v52 = vperm.slane %v45, 4
    %v53 = vperm.slane %v45, 5
    %v54 = vperm.slane %v45, 6
    %v55 = vperm.slane %v45, 7
    %56 = vst [vmem:[#allocation1] ss:$9 sm:$0xff] %v48
    %s57 = scalar_lea.vmem [#allocation1], 1
    %58 = vst [vmem:[%s57] ss:$9 sm:$0xff] %v49
    %s59 = scalar_lea.vmem [#allocation1], 2
    %60 = vst [vmem:[%s59] ss:$9 sm:$0xff] %v50
    %s61 = scalar_lea.vmem [#allocation1], 3
    %62 = vst [vmem:[%s61] ss:$9 sm:$0xff] %v51
    %s63 = scalar_lea.vmem [#allocation1], 4
    %64 = vst [vmem:[%s63] ss:$9 sm:$0xff] %v52
    %s65 = scalar_lea.vmem [#allocation1], 5
    %66 = vst [vmem:[%s65] ss:$9 sm:$0xff] %v53
    %s67 = scalar_lea.vmem [#allocation1], 6
    %68 = vst [vmem:[%s67] ss:$9 sm:$0xff] %v54
    %s69 = scalar_lea.vmem [#allocation1], 7
    %70 = vst [vmem:[%s69] ss:$9 sm:$0xff] %v55
    %v71 = vld [vmem:[#allocation1] sm:$0xff]
    %72 = vset.pattern.permute.xlu0 0
    %73 = vperm.xlu0 %72, %v71
    %v74 = vpop.permute.xlu0 %73
    %v75 = vlaneseq
    %v76 = vand.u32 %v75, 127
    %v77 = vperm.slane %v74, %v76
    %v79 = vadd.f32 %v46, %v77
    %vm80 = vcmask 57344
    %81 = vst.msk [vmem:[#allocation2] sm:$0x1] %vm80, %v79
    // Predicated region
    $region22: #{tpu_custom_call.1} parent=1 // pred_check
      %p82 = pneg %p30
    $region23: #{tpu_custom_call.1} parent=1 // pred_check_branch
      %84 = sbr.rel (%p82) target = $region25
    $region24: #{tpu_custom_call.1} parent=1 // pred_region
      %v85 = vld [vmem:[#allocation2] sm:$0x1]
      %s86 = sld [smem:[#allocation3]]
      %v87 = vstv %s86
      %v88 = vadd.f32 %v85, %v87
      %89 = vst.msk [vmem:[#allocation7] sm:$0x1] %vm80, %v88
    $region25: #{tpu_custom_call.1} parent=1 // pred_fallthru
      _
    // Predicated region
    $region26: #{tpu_custom_call.1} parent=1 // pred_check
      _
    $region27: #{tpu_custom_call.1} parent=1 // pred_check_branch
      %91 = sbr.rel (0) target = $region29
    $region28: #{tpu_custom_call.1} parent=1 // pred_region
      %93 = vsyncadd [#allocation6], 0
      %s95 = sshll.u32 [#allocation7], 4
      %s96 = int_to_ptr.vmem [resolvable:$true] %s95
      %s97 = sshll.u32 %s3, 4
      %s98 = int_to_ptr.hbm [resolvable:$true] %s97
      %100 = dma.vmem_to_hbm [thread:$0]  %s96, 16, %s98, [#allocation6]
    $region29: #{tpu_custom_call.1} parent=1 // pred_fallthru
      _
    // Predicated region
    $region30: #{tpu_custom_call.1} parent=1 // pred_check
      _
    $region31: #{tpu_custom_call.1} parent=1 // pred_check_branch
      %102 = sbr.rel (0) target = $region33
    $region32: #{tpu_custom_call.1} parent=1 // pred_region
      %104 = dma.done [#allocation6], 16
    $region33: #{tpu_custom_call.1} parent=1 // pred_fallthru
      _
    %105 = vsyncpa [#allocation5], 1
    %106 = vsyncpa [#allocation6], 1

</llo_original>
